<compile_context>
chip_gen: v7x
topology: tpu7x:2x2x1
jax: 0.10.0
libtpu: 0.0.40
codegen_flags: <defaults>
</compile_context>

<pallas_src>
import functools

import jax
import jax.numpy as jnp
from jax import lax
from jax.experimental import pallas as pl
from jax.experimental.pallas import tpu as pltpu


def _linear_hardsigmoid_kernel(x_ref, w_ref, b_ref, o_ref):
    """One output-column block: hardsigmoid(x @ W_blk^T + b_blk).

    x_ref: (M, K)   resident activations
    w_ref: (tn, K)  weight block in PyTorch-native (out, in) layout
    b_ref: (1, tn)  f32 bias block
    o_ref: (M, tn)  f32 output block
    """
    xv = x_ref[...].astype(w_ref.dtype)          # no-op when dtypes match; tiny otherwise
    acc = lax.dot_general(
        xv, w_ref[...],
        dimension_numbers=(((1,), (1,)), ((), ())),   # contract K on both sides
        preferred_element_type=jnp.float32)
    v = acc + b_ref[...] + 3.0                   # bias and "+3" fused in-kernel
    v = jnp.minimum(jnp.maximum(v, 0.0), 6.0)    # clamp_min / clamp_max
    o_ref[...] = (v * (1.0 / 6.0)).astype(o_ref.dtype)


def _vmem_capacity_bytes():
    try:
        return int(pltpu.get_tpu_info().vmem_capacity_bytes)
    except Exception:
        return 64 * 1024 * 1024    # conservative (v7x per-TC) fallback


def _pick_tn(N, K, w_itemsize, budget_bytes, min_blocks):
    """Largest divisor of N that is a multiple of 128, fits the W-tile budget
    and leaves at least `min_blocks` grid steps; degrades gracefully."""
    cands = [d for d in range(128, N + 1, 128) if N % d == 0]
    if not cands:
        return N                                   # odd N: single full block
    fit = [d for d in cands if K * d * w_itemsize <= budget_bytes]
    both = [d for d in fit if N // d >= min_blocks]
    if both:
        return max(both)
    if fit:
        return max(fit)
    return cands[0]


@functools.partial(jax.jit, static_argnames=("tn",))
def linear_hardsigmoid(x, w, b, *, tn=None):
    """hardsigmoid(x @ w.T + b) = clamp(x @ w.T + b + 3, 0, 6) / 6.

    x: (M, K) activations (f32 or bf16).
    w: (N, K) weight, PyTorch-native (out_features, in_features) layout.
       Pass a pre-converted bf16 weight (done once at model-load time) for the
       fast path; this wrapper never casts or transposes W per call.
    b: (N,) bias.
    """
    M, K = x.shape
    N, Kw = w.shape
    assert K == Kw and b.shape == (N,)
    assert w.dtype in (jnp.dtype(jnp.float32), jnp.dtype(jnp.bfloat16)), (
        "convert the weight offline; the hot path does not cast W")

    w_itemsize = jnp.dtype(w.dtype).itemsize
    x_itemsize = jnp.dtype(x.dtype).itemsize

    vmem_cap = _vmem_capacity_bytes()
    big_vmem = vmem_cap >= 100 * 1024 * 1024        # v5e / v6e (128 MiB)
    budget = (32 if big_vmem else 12) * 1024 * 1024  # W-tile budget
    min_blocks = 2 if big_vmem else 4                # keep both v7x TCs busy

    if tn is None:
        tn = _pick_tn(N, K, w_itemsize, budget, min_blocks)
    assert N % tn == 0
    n_blocks = N // tn

    w_tile = K * tn * w_itemsize
    cap = (vmem_cap * 3) // 4                        # leave Mosaic scratch headroom

    def _need(nb):
        return (nb * w_tile                          # streamed W buffers
                + 2 * M * K * x_itemsize             # resident x (double-buffered)
                + 2 * (M * tn + tn) * 4              # out + bias blocks (f32)
                + (2 << 20))                         # slack

    # Deeper W prefetch only on 128 MiB parts with enough grid steps and room.
    n_buf = 3 if (big_vmem and n_blocks >= 4 and _need(3) <= cap) else 2
    need = _need(n_buf)
    if need > cap:
        raise ValueError(
            f"tn={tn} needs ~{need >> 20} MiB VMEM but only ~{cap >> 20} MiB usable")
    vmem_limit = min(max(need, 16 << 20), cap)

    w_spec = pl.BlockSpec((tn, K), lambda j: (j, 0))
    if n_buf > 2 and hasattr(pl, "Buffered"):
        try:
            w_spec = pl.BlockSpec((tn, K), lambda j: (j, 0),
                                  pipeline_mode=pl.Buffered(n_buf))
        except TypeError:
            pass                                     # older API: keep default 2 buffers

    bias2d = b.astype(jnp.float32).reshape(1, N)     # layout-only reshape (free)

    cost = pl.CostEstimate(
        flops=2 * M * K * N,
        transcendentals=0,
        bytes_accessed=K * N * w_itemsize + M * K * x_itemsize + M * N * 4 + N * 4,
    )

    return pl.pallas_call(
        _linear_hardsigmoid_kernel,
        out_shape=jax.ShapeDtypeStruct((M, N), jnp.float32),
        grid_spec=pltpu.PrefetchScalarGridSpec(
            num_scalar_prefetch=0,
            grid=(n_blocks,),
            in_specs=[
                pl.BlockSpec((M, K), lambda j: (0, 0)),    # x: resident
                w_spec,                                    # W: contiguous (tn, K) slab
                pl.BlockSpec((1, tn), lambda j: (0, j)),   # bias block
            ],
            out_specs=pl.BlockSpec((M, tn), lambda j: (0, j)),
        ),
        compiler_params=pltpu.CompilerParams(
            dimension_semantics=("parallel",),             # shard N blocks across TCs
            vmem_limit_bytes=int(vmem_limit),
        ),
        cost_estimate=cost,
    )(x, w, bias2d)


if __name__ == "__main__":
    # The PyTorch module is Identity -> Linear(8192, 8192) -> hardsigmoid-ish
    # epilogue on a (1, 8192) input.  Same structure at a test-friendly size.
    D = 1024
    M = 1

    key = jax.random.PRNGKey(0)
    kx, kw, kb = jax.random.split(key, 3)

    x = jax.random.normal(kx, (M, D), dtype=jnp.float32)

    # nn.Linear-style init; weight kept in PyTorch-native (out, in) layout.
    bound = 1.0 / jnp.sqrt(jnp.float32(D))
    w = jax.random.uniform(kw, (D, D), dtype=jnp.float32, minval=-bound, maxval=bound)
    b = jax.random.uniform(kb, (D,), dtype=jnp.float32, minval=-bound, maxval=bound)

    # --- f32 weight path: exact check against the plain-JAX reference ------
    out_f32 = jax.block_until_ready(linear_hardsigmoid(x, w, b))
    ref_f32 = jnp.clip(x @ w.T + b + 3.0, 0.0, 6.0) / 6.0
    assert out_f32.shape == (M, D)
    assert jnp.allclose(out_f32, ref_f32, atol=1e-5, rtol=1e-5)

    # --- bf16 weight path: W converted ONCE ("model-load time"), never in the
    # hot path.  Halves the weight-HBM traffic that bounds this kernel. ------
    w_bf16 = jax.block_until_ready(w.astype(jnp.bfloat16))
    ref_bf16 = jnp.clip(
        lax.dot_general(x.astype(jnp.bfloat16), w_bf16,
                        dimension_numbers=(((1,), (1,)), ((), ())),
                        preferred_element_type=jnp.float32) + b + 3.0,
        0.0, 6.0) / 6.0
    out_bf16 = jax.block_until_ready(linear_hardsigmoid(x, w_bf16, b))
    assert out_bf16.shape == (M, D)
    assert jnp.allclose(out_bf16, ref_bf16, atol=2e-3, rtol=2e-3)

    # --- many-small-blocks path (exercises the deeper-prefetch branch on
    # 128 MiB-VMEM parts and the >=4-block v7x sizing) -----------------------
    out_small = jax.block_until_ready(linear_hardsigmoid(x, w_bf16, b, tn=128))
    assert jnp.allclose(out_small, ref_bf16, atol=2e-3, rtol=2e-3)

    print("KERNEL_OK")
</pallas_src>

<mosaic_0001>
module attributes {stable_mosaic.version = 11 : i64} {
  func.func @_linear_hardsigmoid_kernel(%arg0: i32, %arg1: memref<1x1024xf32, #tpu.memory_space<vmem>>, %arg2: memref<256x1024xf32, #tpu.memory_space<vmem>>, %arg3: memref<1x256xf32, #tpu.memory_space<vmem>>, %arg4: memref<1x256xf32, #tpu.memory_space<vmem>>) attributes {dimension_semantics = [#tpu.dimension_semantics<parallel>], iteration_bounds = array<i64: 4>, scalar_prefetch = 0 : i64, scratch_operands = 0 : i64, tpu.core_type = #tpu.core_type<tc>, window_params = [{pipeline_mode = #tpu.pipeline_mode<synchronous>, transform_indices = @transform_0, window_bounds = array<i64: 1, 1024>}, {transform_indices = @transform_1, window_bounds = array<i64: 256, 1024>}, {transform_indices = @transform_2, window_bounds = array<i64: 1, 256>}, {transform_indices = @transform_3, window_bounds = array<i64: 1, 256>}]} {
    %c0 = arith.constant 0 : index
    %c0_0 = arith.constant 0 : index
    %0 = vector.load %arg1[%c0, %c0_0] : memref<1x1024xf32, #tpu.memory_space<vmem>>, vector<1x1024xf32>
    %c0_1 = arith.constant 0 : index
    %c0_2 = arith.constant 0 : index
    %1 = vector.load %arg2[%c0_1, %c0_2] : memref<256x1024xf32, #tpu.memory_space<vmem>>, vector<256x1024xf32>
    %cst = arith.constant dense<0.000000e+00> : vector<1x256xf32>
    %2 = tpu.matmul %0, %1, %cst {dimension_numbers = #tpu.dot_dimension_numbers<[1], [1], [0], [0], [0, 0, 1, 0], [], []>} : vector<1x1024xf32>, vector<256x1024xf32>, vector<1x256xf32> -> vector<1x256xf32>
    %c0_3 = arith.constant 0 : index
    %c0_4 = arith.constant 0 : index
    %3 = vector.load %arg3[%c0_3, %c0_4] : memref<1x256xf32, #tpu.memory_space<vmem>>, vector<1x256xf32>
    %4 = arith.addf %2, %3 : vector<1x256xf32>
    %cst_5 = arith.constant 3.000000e+00 : f32
    %5 = vector.broadcast %cst_5 : f32 to vector<1x256xf32>
    %6 = arith.addf %4, %5 : vector<1x256xf32>
    %cst_6 = arith.constant 0.000000e+00 : f32
    %7 = vector.broadcast %cst_6 : f32 to vector<1x256xf32>
    %8 = arith.maximumf %6, %7 : vector<1x256xf32>
    %cst_7 = arith.constant 6.000000e+00 : f32
    %9 = vector.broadcast %cst_7 : f32 to vector<1x256xf32>
    %10 = arith.minimumf %8, %9 : vector<1x256xf32>
    %cst_8 = arith.constant 0.166666672 : f32
    %11 = vector.broadcast %cst_8 : f32 to vector<1x256xf32>
    %12 = arith.mulf %10, %11 : vector<1x256xf32>
    %c0_9 = arith.constant 0 : index
    %c0_10 = arith.constant 0 : index
    %13 = vector.load %arg4[%c0_9, %c0_10] : memref<1x256xf32, #tpu.memory_space<vmem>>, vector<1x256xf32>
    tpu.vector_store %arg4[%c0_9, %c0_10], %12 {strides = array<i32>} : memref<1x256xf32, #tpu.memory_space<vmem>>, vector<1x256xf32>,
    return
  }
  func.func @transform_0(%arg0: i32) -> (i32, i32) {
    %c0_i32 = arith.constant 0 : i32
    %c0_i32_0 = arith.constant 0 : i32
    %c0_i32_1 = arith.constant 0 : i32
    return %c0_i32, %c0_i32_0 : i32, i32
  }
  func.func @transform_1(%arg0: i32) -> (i32, i32) {
    %c0_i32 = arith.constant 0 : i32
    %c0_i32_0 = arith.constant 0 : i32
    return %arg0, %c0_i32 : i32, i32
  }
  func.func @transform_2(%arg0: i32) -> (i32, i32) {
    %c0_i32 = arith.constant 0 : i32
    %c0_i32_0 = arith.constant 0 : i32
    return %c0_i32, %arg0 : i32, i32
  }
  func.func @transform_3(%arg0: i32) -> (i32, i32) {
    %c0_i32 = arith.constant 0 : i32
    %c0_i32_0 = arith.constant 0 : i32
    return %c0_i32, %arg0 : i32, i32
  }
}

</mosaic_0001>

<llo_original>
// kernel: linear_hardsigmoid.1
$region0: #{linear_hardsigmoid.1}
  #allocation0 [shape = 'u32[]', space=smem, size = 0x4, offset = 0x4, fixed_abs, tag = 'smem constant byte address 0x4 - core index']
  #allocation1 [shape = 'u32[144,128]{1,0:T(1,128)}', space=vmem, size = 0x12000, scoped, tag = 'internal scratch']
  %s0 = inlined_call_operand.hbm [shape: f32[1,1024], index: 0, kind: input, shape index: {}]
  %s1 = inlined_call_operand.hbm [shape: f32[1024,1024], index: 1, kind: input, shape index: {}]
  %s2 = inlined_call_operand.hbm [shape: f32[1,1024], index: 2, kind: input, shape index: {}]
  %s3 = inlined_call_operand.hbm [shape: f32[1,1024], index: 3, kind: output, shape index: {}]
  %s4 = sld [smem:[#allocation0]]
  $region57: #{linear_hardsigmoid.1} parent=0
    _
  %s6 = ssub.s32 1, %s4
  %s7 = scalar_select 0, %s6, %s4
  $region1: #{linear_hardsigmoid.1} parent=0
    #allocation2 [shape = 'u8[4096]{0}', space=vmem, size = 0x1000, scoped, tag = 'input window, operand 0, single buffered']
    #allocation3 [shape = 's32[2]{0}', space=sflag, size = 0x8, scoped, tag = 'scoped memory for linear_hardsigmoid.1']
    #allocation4 [shape = 's32[2]{0}', space=sflag, size = 0x8, scoped, tag = 'scoped memory for linear_hardsigmoid.1']
    #allocation5 [shape = 'u8[2097152]{0}', space=vmem, size = 0x200000, scoped, tag = 'input window, operand 1']
    #allocation6 [shape = 's32[2]{0}', space=sflag, size = 0x8, scoped, tag = 'scoped memory for linear_hardsigmoid.1']
    #allocation7 [shape = 'u8[2048]{0}', space=vmem, size = 0x800, scoped, tag = 'input window, operand 2']
    #allocation8 [shape = 'u8[2048]{0}', space=vmem, size = 0x800, scoped, tag = 'output window, operand 0']
    %8 = vsyncpa [#allocation3], 0
    %9 = vsyncpa [#allocation6], 0
    %s10 = scalar_lea.sflag [#allocation6], 1
    %11 = vsyncpa %s10, 0
    %12 = vsyncpa [#allocation4], 0
    %s13 = scalar_lea.sflag [#allocation4], 1
    %14 = vsyncpa %s13, 0
    loop: start=0, step=1, limit=6
    $region2: #{linear_hardsigmoid.1} parent=1 // loop_pre_header
      _
    $region3: #{linear_hardsigmoid.1} parent=1 // loop_header
      %s16 = sphi 0, %s20
      %p17 = scmp.ge.s32.totalorder %s16, 6
      %s24 = sphi 0, %s24
      %s26 = sphi 0, %s24
      %s27 = sphi 0, %s26
      %s41 = sphi 0, %s27
      %s47 = sphi 0, %s49
      %s50 = sphi 0, %s47
      %s51 = sphi 0, %s50
      %s67 = sphi 0, %s51
      %s73 = sphi 0, %s75
      %s76 = sphi 0, %s73
      %s77 = sphi 0, %s76
      %s93 = sphi 0, %s77
      %s99 = sphi 0, %s101
      %s102 = sphi 0, %s99
      %s103 = sphi 0, %s102
      %s119 = sphi 0, %s103
    $region4: #{linear_hardsigmoid.1} parent=1 // loop_header_branch
      %19 = sbr.rel (%p17) target = $region8
    $region5: #{linear_hardsigmoid.1} parent=1 // loop_body
      %s21 = ssub.s32 %s16, 1
      %s22 = ssub.s32 %s16, 2
      %s23 = sadd.s32 %s16, 1
      %s25 = sadd.s32 %s24, 1
      %p28 = scmp.eq.s32.totalorder %s16, 3
      %p29 = scmp.ne.s32.totalorder %s24, %s26
      %p30 = scmp.eq.s32.totalorder %s16, 0
      %p31 = por %p29, %p30
      %p32 = scmp.ne.s32.totalorder %s24, %s26
      %p33 = scmp.eq.s32.totalorder %s21, 3
      %p34 = por %p32, %p33
      %p35 = scmp.ne.s32.totalorder %s26, %s27
      %p36 = scmp.eq.s32.totalorder %s21, 0
      %p37 = por %p35, %p36
      %p38 = scmp.ne.s32.totalorder %s26, %s27
      %p39 = scmp.eq.s32.totalorder %s22, 3
      %p40 = por %p38, %p39
      %p42 = scmp.ne.s32.totalorder %s27, %s41
      %p43 = scmp.eq.s32.totalorder %s22, 0
      %p44 = por %p42, %p43
      %s45 = ssub.s32 %s16, %s23
      %p46 = scmp.eq.s32.totalorder %s45, 0
      %s48 = sadd.s32 %s47, 1
      %s49 = scalar_select %p46, %s47, %s48
      %p52 = pneg %p46
      %p53 = scmp.eq.s32.totalorder %s16, 3
      %p54 = por %p52, %p53
      %p55 = scmp.ne.s32.totalorder %s47, %s50
      %p56 = scmp.eq.s32.totalorder %s16, 0
      %p57 = por %p55, %p56
      %p58 = scmp.ne.s32.totalorder %s47, %s50
      %p59 = scmp.eq.s32.totalorder %s21, 3
      %p60 = por %p58, %p59
      %p61 = scmp.ne.s32.totalorder %s50, %s51
      %p62 = scmp.eq.s32.totalorder %s21, 0
      %p63 = por %p61, %p62
      %p64 = scmp.ne.s32.totalorder %s50, %s51
      %p65 = scmp.eq.s32.totalorder %s22, 3
      %p66 = por %p64, %p65
      %p68 = scmp.ne.s32.totalorder %s51, %s67
      %p69 = scmp.eq.s32.totalorder %s22, 0
      %p70 = por %p68, %p69
      %s71 = ssub.s32 %s16, %s23
      %p72 = scmp.eq.s32.totalorder %s71, 0
      %s74 = sadd.s32 %s73, 1
      %s75 = scalar_select %p72, %s73, %s74
      %p78 = pneg %p72
      %p79 = scmp.eq.s32.totalorder %s16, 3
      %p80 = por %p78, %p79
      %p81 = scmp.ne.s32.totalorder %s73, %s76
      %p82 = scmp.eq.s32.totalorder %s16, 0
      %p83 = por %p81, %p82
      %p84 = scmp.ne.s32.totalorder %s73, %s76
      %p85 = scmp.eq.s32.totalorder %s21, 3
      %p86 = por %p84, %p85
      %p87 = scmp.ne.s32.totalorder %s76, %s77
      %p88 = scmp.eq.s32.totalorder %s21, 0
      %p89 = por %p87, %p88
      %p90 = scmp.ne.s32.totalorder %s76, %s77
      %p91 = scmp.eq.s32.totalorder %s22, 3
      %p92 = por %p90, %p91
      %p94 = scmp.ne.s32.totalorder %s77, %s93
      %p95 = scmp.eq.s32.totalorder %s22, 0
      %p96 = por %p94, %p95
      %s97 = ssub.s32 %s16, %s23
      %p98 = scmp.eq.s32.totalorder %s97, 0
      %s100 = sadd.s32 %s99, 1
      %s101 = scalar_select %p98, %s99, %s100
      %p104 = pneg %p98
      %p105 = scmp.eq.s32.totalorder %s16, 3
      %p106 = por %p104, %p105
      %p107 = scmp.ne.s32.totalorder %s99, %s102
      %p108 = scmp.eq.s32.totalorder %s16, 0
      %p109 = por %p107, %p108
      %p110 = scmp.ne.s32.totalorder %s99, %s102
      %p111 = scmp.eq.s32.totalorder %s21, 3
      %p112 = por %p110, %p111
      %p113 = scmp.ne.s32.totalorder %s102, %s103
      %p114 = scmp.eq.s32.totalorder %s21, 0
      %p115 = por %p113, %p114
      %p116 = scmp.ne.s32.totalorder %s102, %s103
      %p117 = scmp.eq.s32.totalorder %s22, 3
      %p118 = por %p116, %p117
      %p120 = scmp.ne.s32.totalorder %s103, %s119
      %p121 = scmp.eq.s32.totalorder %s22, 0
      %p122 = por %p120, %p121
      %p123 = scmp.le.s32.totalorder 1, %s16
      %p124 = scmp.lt.s32.totalorder %s16, 5
      %p125 = pnand %p123, %p124
      %p126 = pneg %p125
      // Predicated region
      $region9: #{linear_hardsigmoid.1} parent=5 // pred_check
        _
      $region10: #{linear_hardsigmoid.1} parent=5 // pred_check_branch
        %128 = sbr.rel (%p125) target = $region12
      $region11: #{linear_hardsigmoid.1} parent=5 // pred_region
        %s129 = ssub.s32 %s16, 1
        // Predicated region
        $region13: #{linear_hardsigmoid.1} parent=11 // pred_check
          %p130 = pneg %p37
        $region14: #{linear_hardsigmoid.1} parent=11 // pred_check_branch
          %132 = sbr.rel (%p130) target = $region16
        $region15: #{linear_hardsigmoid.1} parent=11 // pred_region
          %s134 = ssub.s32 128, 128
          %135 = vsyncadd [#allocation3], %s134
          %s137 = sshll.u32 [#allocation2], 4
          %s138 = int_to_ptr.vmem [resolvable:$true] %s137
          %140 = dma.hbm_to_vmem [thread:$0]  %s0, 128, %s138, [#allocation3]
        $region16: #{linear_hardsigmoid.1} parent=11 // pred_fallthru
          _
      $region12: #{linear_hardsigmoid.1} parent=5 // pred_fallthru
        _
      %p141 = scmp.lt.s32.totalorder %s16, 4
      // Predicated region
      $region17: #{linear_hardsigmoid.1} parent=5 // pred_check
        %p142 = pneg %p141
      $region18: #{linear_hardsigmoid.1} parent=5 // pred_check_branch
        %144 = sbr.rel (%p142) target = $region20
      $region19: #{linear_hardsigmoid.1} parent=5 // pred_region
        // Predicated region
        $region21: #{linear_hardsigmoid.1} parent=19 // pred_check
          %p145 = pneg %p57
        $region22: #{linear_hardsigmoid.1} parent=19 // pred_check_branch
          %147 = sbr.rel (%p145) target = $region24
        $region23: #{linear_hardsigmoid.1} parent=19 // pred_region
          %s148 = sand.u32 %s16, 1
          %s149 = scalar_lea.sflag [#allocation6], %s148
          %s150 = sand.u32 %s47, 1
          %s151 = smul.addr %s150, 2048
          %s152 = scalar_lea.vmem [#allocation5], %s151
          %s153 = smul.u32 32, %s16
          %s155 = ssub.s32 32768, 32768
          %156 = vsyncadd %s149, %s155
          %s157 = smul.addr %s153, 8
          %s158 = smul.addr %s157, 128
          %s159 = scalar_lea.hbm %s1, %s158
          %s160 = sshll.u32 %s152, 4
          %s161 = int_to_ptr.vmem [resolvable:$true] %s160
          %166 = dma.hbm_to_vmem [thread:$0]  %s159, 32768, %s161, %s149, 1024, 1024, 64
        $region24: #{linear_hardsigmoid.1} parent=19 // pred_fallthru
          _
        // Predicated region
        $region25: #{linear_hardsigmoid.1} parent=19 // pred_check
          %p167 = pneg %p83
        $region26: #{linear_hardsigmoid.1} parent=19 // pred_check_branch
          %169 = sbr.rel (%p167) target = $region28
        $region27: #{linear_hardsigmoid.1} parent=19 // pred_region
          %s170 = sand.u32 %s16, 1
          %s171 = scalar_lea.sflag [#allocation6], %s170
          %s172 = sand.u32 %s73, 1
          %s173 = smul.addr %s172, 2
          %s174 = scalar_lea.vmem [#allocation7], %s173
          %s175 = smul.u32 2, %s16
          %s177 = ssub.s32 32, 32
          %178 = vsyncadd %s171, %s177
          %s179 = smul.addr %s175, 16
          %s180 = scalar_lea.hbm %s2, %s179
          %s182 = sshll.u32 %s174, 4
          %s183 = int_to_ptr.vmem [resolvable:$true] %s182
          %185 = dma.hbm_to_vmem [thread:$0]  %s180, 32, %s183, %s171
        $region28: #{linear_hardsigmoid.1} parent=19 // pred_fallthru
          _
      $region20: #{linear_hardsigmoid.1} parent=5 // pred_fallthru
        _
      %p186 = scmp.le.s32.totalorder 1, %s16
      %p187 = scmp.lt.s32.totalorder %s16, 5
      %p188 = pnand %p186, %p187
      %p189 = pneg %p188
      // Predicated region
      $region29: #{linear_hardsigmoid.1} parent=5 // pred_check
        _
      $region30: #{linear_hardsigmoid.1} parent=5 // pred_check_branch
        %191 = sbr.rel (%p188) target = $region32
      $region31: #{linear_hardsigmoid.1} parent=5 // pred_region
        %s192 = ssub.s32 %s16, 1
        // Predicated region
        $region33: #{linear_hardsigmoid.1} parent=31 // pred_check
          %p193 = pneg %p37
        $region34: #{linear_hardsigmoid.1} parent=31 // pred_check_branch
          %195 = sbr.rel (%p193) target = $region36
        $region35: #{linear_hardsigmoid.1} parent=31 // pred_region
          %196 = dma.done [#allocation3], 128
        $region36: #{linear_hardsigmoid.1} parent=31 // pred_fallthru
          _
        %s197 = sand.u32 %s21, 1
        %s198 = scalar_lea.sflag [#allocation6], %s197
        %s199 = sand.u32 %s50, 1
        %s200 = smul.addr %s199, 2048
        %s201 = scalar_lea.vmem [#allocation5], %s200
        // Predicated region
        $region37: #{linear_hardsigmoid.1} parent=31 // pred_check
          %p202 = pneg %p63
        $region38: #{linear_hardsigmoid.1} parent=31 // pred_check_branch
          %204 = sbr.rel (%p202) target = $region40
        $region39: #{linear_hardsigmoid.1} parent=31 // pred_region
          %205 = dma.done %s198, 32768
        $region40: #{linear_hardsigmoid.1} parent=31 // pred_fallthru
          _
        %s206 = sand.u32 %s21, 1
        %s207 = scalar_lea.sflag [#allocation6], %s206
        %s208 = sand.u32 %s76, 1
        %s209 = smul.addr %s208, 2
        %s210 = scalar_lea.vmem [#allocation7], %s209
        // Predicated region
        $region41: #{linear_hardsigmoid.1} parent=31 // pred_check
          %p211 = pneg %p89
        $region42: #{linear_hardsigmoid.1} parent=31 // pred_check_branch
          %213 = sbr.rel (%p211) target = $region44
        $region43: #{linear_hardsigmoid.1} parent=31 // pred_region
          %214 = dma.done %s207, 32
        $region44: #{linear_hardsigmoid.1} parent=31 // pred_fallthru
          _
        %p215 = pneg %p37
        %p216 = pneg %p34
        %s217 = sand.u32 %s21, 1
        %s218 = scalar_lea.sflag [#allocation6], %s217
        %s219 = sand.u32 %s50, 1
        %s220 = smul.addr %s219, 2048
        %s221 = scalar_lea.vmem [#allocation5], %s220
        %p222 = pneg %p63
        %p223 = pneg %p60
        %s224 = sand.u32 %s21, 1
        %s225 = scalar_lea.sflag [#allocation6], %s224
        %s226 = sand.u32 %s76, 1
        %s227 = smul.addr %s226, 2
        %s228 = scalar_lea.vmem [#allocation7], %s227
        %p229 = pneg %p89
        %p230 = pneg %p86
        %p231 = pneg %p115
        %p232 = pneg %p112
        %s233 = sand.u32 %s102, 1
        %s234 = scalar_lea.sflag [#allocation4], %s233
        %s235 = sand.u32 %s102, 1
        %s236 = smul.addr %s235, 2
        %s237 = scalar_lea.vmem [#allocation8], %s236
        %s238 = smul.u32 32, %s21
        %s239 = smul.u32 2, %s21
        %s240 = smul.u32 2, %s21
        %v241 = vld [vmem:[#allocation2] sm:$0xff]
        %v242 = vld [vmem:[%s201] sm:$0xff]
        %v243 = vld [vmem:[%s201 + $0x8] sm:$0xff]
        %v244 = vld [vmem:[%s201 + $0x10] sm:$0xff]
        %v245 = vld [vmem:[%s201 + $0x18] sm:$0xff]
        %v246 = vld [vmem:[%s201 + $0x20] sm:$0xff]
        %v247 = vld [vmem:[%s201 + $0x28] sm:$0xff]
        %v248 = vld [vmem:[%s201 + $0x30] sm:$0xff]
        %v249 = vld [vmem:[%s201 + $0x38] sm:$0xff]
        %v250 = vld [vmem:[%s201 + $0x40] sm:$0xff]
        %v251 = vld [vmem:[%s201 + $0x48] sm:$0xff]
        %v252 = vld [vmem:[%s201 + $0x50] sm:$0xff]
        %v253 = vld [vmem:[%s201 + $0x58] sm:$0xff]
        %v254 = vld [vmem:[%s201 + $0x60] sm:$0xff]
        %v255 = vld [vmem:[%s201 + $0x68] sm:$0xff]
        %v256 = vld [vmem:[%s201 + $0x70] sm:$0xff]
        %v257 = vld [vmem:[%s201 + $0x78] sm:$0xff]
        %v258 = vld [vmem:[%s201 + $0x80] sm:$0xff]
        %v259 = vld [vmem:[%s201 + $0x88] sm:$0xff]
        %v260 = vld [vmem:[%s201 + $0x90] sm:$0xff]
        %v261 = vld [vmem:[%s201 + $0x98] sm:$0xff]
        %v262 = vld [vmem:[%s201 + $0xa0] sm:$0xff]
        %v263 = vld [vmem:[%s201 + $0xa8] sm:$0xff]
        %v264 = vld [vmem:[%s201 + $0xb0] sm:$0xff]
        %v265 = vld [vmem:[%s201 + $0xb8] sm:$0xff]
        %v266 = vld [vmem:[%s201 + $0xc0] sm:$0xff]
        %v267 = vld [vmem:[%s201 + $0xc8] sm:$0xff]
        %v268 = vld [vmem:[%s201 + $0xd0] sm:$0xff]
        %v269 = vld [vmem:[%s201 + $0xd8] sm:$0xff]
        %v270 = vld [vmem:[%s201 + $0xe0] sm:$0xff]
        %v271 = vld [vmem:[%s201 + $0xe8] sm:$0xff]
        %v272 = vld [vmem:[%s201 + $0xf0] sm:$0xff]
        %v273 = vld [vmem:[%s201 + $0xf8] sm:$0xff]
        %v274 = vld [vmem:[%s201 + $0x100] sm:$0xff]
        %v275 = vld [vmem:[%s201 + $0x108] sm:$0xff]
        %v276 = vld [vmem:[%s201 + $0x110] sm:$0xff]
        %v277 = vld [vmem:[%s201 + $0x118] sm:$0xff]
        %v278 = vld [vmem:[%s201 + $0x120] sm:$0xff]
        %v279 = vld [vmem:[%s201 + $0x128] sm:$0xff]
        %v280 = vld [vmem:[%s201 + $0x130] sm:$0xff]
        %v281 = vld [vmem:[%s201 + $0x138] sm:$0xff]
        %v282 = vld [vmem:[%s201 + $0x140] sm:$0xff]
        %v283 = vld [vmem:[%s201 + $0x148] sm:$0xff]
        %v284 = vld [vmem:[%s201 + $0x150] sm:$0xff]
        %v285 = vld [vmem:[%s201 + $0x158] sm:$0xff]
        %v286 = vld [vmem:[%s201 + $0x160] sm:$0xff]
        %v287 = vld [vmem:[%s201 + $0x168] sm:$0xff]
        %v288 = vld [vmem:[%s201 + $0x170] sm:$0xff]
        %v289 = vld [vmem:[%s201 + $0x178] sm:$0xff]
        %v290 = vld [vmem:[%s201 + $0x180] sm:$0xff]
        %v291 = vld [vmem:[%s201 + $0x188] sm:$0xff]
        %v292 = vld [vmem:[%s201 + $0x190] sm:$0xff]
        %v293 = vld [vmem:[%s201 + $0x198] sm:$0xff]
        %v294 = vld [vmem:[%s201 + $0x1a0] sm:$0xff]
        %v295 = vld [vmem:[%s201 + $0x1a8] sm:$0xff]
        %v296 = vld [vmem:[%s201 + $0x1b0] sm:$0xff]
        %v297 = vld [vmem:[%s201 + $0x1b8] sm:$0xff]
        %v298 = vld [vmem:[%s201 + $0x1c0] sm:$0xff]
        %v299 = vld [vmem:[%s201 + $0x1c8] sm:$0xff]
        %v300 = vld [vmem:[%s201 + $0x1d0] sm:$0xff]
        %v301 = vld [vmem:[%s201 + $0x1d8] sm:$0xff]
        %v302 = vld [vmem:[%s201 + $0x1e0] sm:$0xff]
        %v303 = vld [vmem:[%s201 + $0x1e8] sm:$0xff]
        %v304 = vld [vmem:[%s201 + $0x1f0] sm:$0xff]
        %v305 = vld [vmem:[%s201 + $0x1f8] sm:$0xff]
        %v306 = vld [vmem:[%s201 + $0x200] sm:$0xff]
        %v307 = vld [vmem:[%s201 + $0x208] sm:$0xff]
        %v308 = vld [vmem:[%s201 + $0x210] sm:$0xff]
        %v309 = vld [vmem:[%s201 + $0x218] sm:$0xff]
        %v310 = vld [vmem:[%s201 + $0x220] sm:$0xff]
        %v311 = vld [vmem:[%s201 + $0x228] sm:$0xff]
        %v312 = vld [vmem:[%s201 + $0x230] sm:$0xff]
        %v313 = vld [vmem:[%s201 + $0x238] sm:$0xff]
        %v314 = vld [vmem:[%s201 + $0x240] sm:$0xff]
        %v315 = vld [vmem:[%s201 + $0x248] sm:$0xff]
        %v316 = vld [vmem:[%s201 + $0x250] sm:$0xff]
        %v317 = vld [vmem:[%s201 + $0x258] sm:$0xff]
        %v318 = vld [vmem:[%s201 + $0x260] sm:$0xff]
        %v319 = vld [vmem:[%s201 + $0x268] sm:$0xff]
        %v320 = vld [vmem:[%s201 + $0x270] sm:$0xff]
        %v321 = vld [vmem:[%s201 + $0x278] sm:$0xff]
        %v322 = vld [vmem:[%s201 + $0x280] sm:$0xff]
        %v323 = vld [vmem:[%s201 + $0x288] sm:$0xff]
        %v324 = vld [vmem:[%s201 + $0x290] sm:$0xff]
        %v325 = vld [vmem:[%s201 + $0x298] sm:$0xff]
        %v326 = vld [vmem:[%s201 + $0x2a0] sm:$0xff]
        %v327 = vld [vmem:[%s201 + $0x2a8] sm:$0xff]
        %v328 = vld [vmem:[%s201 + $0x2b0] sm:$0xff]
        %v329 = vld [vmem:[%s201 + $0x2b8] sm:$0xff]
        %v330 = vld [vmem:[%s201 + $0x2c0] sm:$0xff]
        %v331 = vld [vmem:[%s201 + $0x2c8] sm:$0xff]
        %v332 = vld [vmem:[%s201 + $0x2d0] sm:$0xff]
        %v333 = vld [vmem:[%s201 + $0x2d8] sm:$0xff]
        %v334 = vld [vmem:[%s201 + $0x2e0] sm:$0xff]
        %v335 = vld [vmem:[%s201 + $0x2e8] sm:$0xff]
        %v336 = vld [vmem:[%s201 + $0x2f0] sm:$0xff]
        %v337 = vld [vmem:[%s201 + $0x2f8] sm:$0xff]
        %v338 = vld [vmem:[%s201 + $0x300] sm:$0xff]
        %v339 = vld [vmem:[%s201 + $0x308] sm:$0xff]
        %v340 = vld [vmem:[%s201 + $0x310] sm:$0xff]
        %v341 = vld [vmem:[%s201 + $0x318] sm:$0xff]
        %v342 = vld [vmem:[%s201 + $0x320] sm:$0xff]
        %v343 = vld [vmem:[%s201 + $0x328] sm:$0xff]
        %v344 = vld [vmem:[%s201 + $0x330] sm:$0xff]
        %v345 = vld [vmem:[%s201 + $0x338] sm:$0xff]
        %v346 = vld [vmem:[%s201 + $0x340] sm:$0xff]
        %v347 = vld [vmem:[%s201 + $0x348] sm:$0xff]
        %v348 = vld [vmem:[%s201 + $0x350] sm:$0xff]
        %v349 = vld [vmem:[%s201 + $0x358] sm:$0xff]
        %v350 = vld [vmem:[%s201 + $0x360] sm:$0xff]
        %v351 = vld [vmem:[%s201 + $0x368] sm:$0xff]
        %v352 = vld [vmem:[%s201 + $0x370] sm:$0xff]
        %v353 = vld [vmem:[%s201 + $0x378] sm:$0xff]
        %v354 = vld [vmem:[%s201 + $0x380] sm:$0xff]
        %v355 = vld [vmem:[%s201 + $0x388] sm:$0xff]
        %v356 = vld [vmem:[%s201 + $0x390] sm:$0xff]
        %v357 = vld [vmem:[%s201 + $0x398] sm:$0xff]
        %v358 = vld [vmem:[%s201 + $0x3a0] sm:$0xff]
        %v359 = vld [vmem:[%s201 + $0x3a8] sm:$0xff]
        %v360 = vld [vmem:[%s201 + $0x3b0] sm:$0xff]
        %v361 = vld [vmem:[%s201 + $0x3b8] sm:$0xff]
        %v362 = vld [vmem:[%s201 + $0x3c0] sm:$0xff]
        %v363 = vld [vmem:[%s201 + $0x3c8] sm:$0xff]
        %v364 = vld [vmem:[%s201 + $0x3d0] sm:$0xff]
        %v365 = vld [vmem:[%s201 + $0x3d8] sm:$0xff]
        %v366 = vld [vmem:[%s201 + $0x3e0] sm:$0xff]
        %v367 = vld [vmem:[%s201 + $0x3e8] sm:$0xff]
        %v368 = vld [vmem:[%s201 + $0x3f0] sm:$0xff]
        %v369 = vld [vmem:[%s201 + $0x3f8] sm:$0xff]
        %v370 = vld [vmem:[%s201 + $0x400] sm:$0xff]
        %v371 = vld [vmem:[%s201 + $0x408] sm:$0xff]
        %v372 = vld [vmem:[%s201 + $0x410] sm:$0xff]
        %v373 = vld [vmem:[%s201 + $0x418] sm:$0xff]
        %v374 = vld [vmem:[%s201 + $0x420] sm:$0xff]
        %v375 = vld [vmem:[%s201 + $0x428] sm:$0xff]
        %v376 = vld [vmem:[%s201 + $0x430] sm:$0xff]
        %v377 = vld [vmem:[%s201 + $0x438] sm:$0xff]
        %v378 = vld [vmem:[%s201 + $0x440] sm:$0xff]
        %v379 = vld [vmem:[%s201 + $0x448] sm:$0xff]
        %v380 = vld [vmem:[%s201 + $0x450] sm:$0xff]
        %v381 = vld [vmem:[%s201 + $0x458] sm:$0xff]
        %v382 = vld [vmem:[%s201 + $0x460] sm:$0xff]
        %v383 = vld [vmem:[%s201 + $0x468] sm:$0xff]
        %v384 = vld [vmem:[%s201 + $0x470] sm:$0xff]
        %v385 = vld [vmem:[%s201 + $0x478] sm:$0xff]
        %v386 = vld [vmem:[%s201 + $0x480] sm:$0xff]
        %v387 = vld [vmem:[%s201 + $0x488] sm:$0xff]
        %v388 = vld [vmem:[%s201 + $0x490] sm:$0xff]
        %v389 = vld [vmem:[%s201 + $0x498] sm:$0xff]
        %v390 = vld [vmem:[%s201 + $0x4a0] sm:$0xff]
        %v391 = vld [vmem:[%s201 + $0x4a8] sm:$0xff]
        %v392 = vld [vmem:[%s201 + $0x4b0] sm:$0xff]
        %v393 = vld [vmem:[%s201 + $0x4b8] sm:$0xff]
        %v394 = vld [vmem:[%s201 + $0x4c0] sm:$0xff]
        %v395 = vld [vmem:[%s201 + $0x4c8] sm:$0xff]
        %v396 = vld [vmem:[%s201 + $0x4d0] sm:$0xff]
        %v397 = vld [vmem:[%s201 + $0x4d8] sm:$0xff]
        %v398 = vld [vmem:[%s201 + $0x4e0] sm:$0xff]
        %v399 = vld [vmem:[%s201 + $0x4e8] sm:$0xff]
        %v400 = vld [vmem:[%s201 + $0x4f0] sm:$0xff]
        %v401 = vld [vmem:[%s201 + $0x4f8] sm:$0xff]
        %v402 = vld [vmem:[%s201 + $0x500] sm:$0xff]
        %v403 = vld [vmem:[%s201 + $0x508] sm:$0xff]
        %v404 = vld [vmem:[%s201 + $0x510] sm:$0xff]
        %v405 = vld [vmem:[%s201 + $0x518] sm:$0xff]
        %v406 = vld [vmem:[%s201 + $0x520] sm:$0xff]
        %v407 = vld [vmem:[%s201 + $0x528] sm:$0xff]
        %v408 = vld [vmem:[%s201 + $0x530] sm:$0xff]
        %v409 = vld [vmem:[%s201 + $0x538] sm:$0xff]
        %v410 = vld [vmem:[%s201 + $0x540] sm:$0xff]
        %v411 = vld [vmem:[%s201 + $0x548] sm:$0xff]
        %v412 = vld [vmem:[%s201 + $0x550] sm:$0xff]
        %v413 = vld [vmem:[%s201 + $0x558] sm:$0xff]
        %v414 = vld [vmem:[%s201 + $0x560] sm:$0xff]
        %v415 = vld [vmem:[%s201 + $0x568] sm:$0xff]
        %v416 = vld [vmem:[%s201 + $0x570] sm:$0xff]
        %v417 = vld [vmem:[%s201 + $0x578] sm:$0xff]
        %v418 = vld [vmem:[%s201 + $0x580] sm:$0xff]
        %v419 = vld [vmem:[%s201 + $0x588] sm:$0xff]
        %v420 = vld [vmem:[%s201 + $0x590] sm:$0xff]
        %v421 = vld [vmem:[%s201 + $0x598] sm:$0xff]
        %v422 = vld [vmem:[%s201 + $0x5a0] sm:$0xff]
        %v423 = vld [vmem:[%s201 + $0x5a8] sm:$0xff]
        %v424 = vld [vmem:[%s201 + $0x5b0] sm:$0xff]
        %v425 = vld [vmem:[%s201 + $0x5b8] sm:$0xff]
        %v426 = vld [vmem:[%s201 + $0x5c0] sm:$0xff]
        %v427 = vld [vmem:[%s201 + $0x5c8] sm:$0xff]
        %v428 = vld [vmem:[%s201 + $0x5d0] sm:$0xff]
        %v429 = vld [vmem:[%s201 + $0x5d8] sm:$0xff]
        %v430 = vld [vmem:[%s201 + $0x5e0] sm:$0xff]
        %v431 = vld [vmem:[%s201 + $0x5e8] sm:$0xff]
        %v432 = vld [vmem:[%s201 + $0x5f0] sm:$0xff]
        %v433 = vld [vmem:[%s201 + $0x5f8] sm:$0xff]
        %v434 = vld [vmem:[%s201 + $0x600] sm:$0xff]
        %v435 = vld [vmem:[%s201 + $0x608] sm:$0xff]
        %v436 = vld [vmem:[%s201 + $0x610] sm:$0xff]
        %v437 = vld [vmem:[%s201 + $0x618] sm:$0xff]
        %v438 = vld [vmem:[%s201 + $0x620] sm:$0xff]
        %v439 = vld [vmem:[%s201 + $0x628] sm:$0xff]
        %v440 = vld [vmem:[%s201 + $0x630] sm:$0xff]
        %v441 = vld [vmem:[%s201 + $0x638] sm:$0xff]
        %v442 = vld [vmem:[%s201 + $0x640] sm:$0xff]
        %v443 = vld [vmem:[%s201 + $0x648] sm:$0xff]
        %v444 = vld [vmem:[%s201 + $0x650] sm:$0xff]
        %v445 = vld [vmem:[%s201 + $0x658] sm:$0xff]
        %v446 = vld [vmem:[%s201 + $0x660] sm:$0xff]
        %v447 = vld [vmem:[%s201 + $0x668] sm:$0xff]
        %v448 = vld [vmem:[%s201 + $0x670] sm:$0xff]
        %v449 = vld [vmem:[%s201 + $0x678] sm:$0xff]
        %v450 = vld [vmem:[%s201 + $0x680] sm:$0xff]
        %v451 = vld [vmem:[%s201 + $0x688] sm:$0xff]
        %v452 = vld [vmem:[%s201 + $0x690] sm:$0xff]
        %v453 = vld [vmem:[%s201 + $0x698] sm:$0xff]
        %v454 = vld [vmem:[%s201 + $0x6a0] sm:$0xff]
        %v455 = vld [vmem:[%s201 + $0x6a8] sm:$0xff]
        %v456 = vld [vmem:[%s201 + $0x6b0] sm:$0xff]
        %v457 = vld [vmem:[%s201 + $0x6b8] sm:$0xff]
        %v458 = vld [vmem:[%s201 + $0x6c0] sm:$0xff]
        %v459 = vld [vmem:[%s201 + $0x6c8] sm:$0xff]
        %v460 = vld [vmem:[%s201 + $0x6d0] sm:$0xff]
        %v461 = vld [vmem:[%s201 + $0x6d8] sm:$0xff]
        %v462 = vld [vmem:[%s201 + $0x6e0] sm:$0xff]
        %v463 = vld [vmem:[%s201 + $0x6e8] sm:$0xff]
        %v464 = vld [vmem:[%s201 + $0x6f0] sm:$0xff]
        %v465 = vld [vmem:[%s201 + $0x6f8] sm:$0xff]
        %v466 = vld [vmem:[%s201 + $0x700] sm:$0xff]
        %v467 = vld [vmem:[%s201 + $0x708] sm:$0xff]
        %v468 = vld [vmem:[%s201 + $0x710] sm:$0xff]
        %v469 = vld [vmem:[%s201 + $0x718] sm:$0xff]
        %v470 = vld [vmem:[%s201 + $0x720] sm:$0xff]
        %v471 = vld [vmem:[%s201 + $0x728] sm:$0xff]
        %v472 = vld [vmem:[%s201 + $0x730] sm:$0xff]
        %v473 = vld [vmem:[%s201 + $0x738] sm:$0xff]
        %v474 = vld [vmem:[%s201 + $0x740] sm:$0xff]
        %v475 = vld [vmem:[%s201 + $0x748] sm:$0xff]
        %v476 = vld [vmem:[%s201 + $0x750] sm:$0xff]
        %v477 = vld [vmem:[%s201 + $0x758] sm:$0xff]
        %v478 = vld [vmem:[%s201 + $0x760] sm:$0xff]
        %v479 = vld [vmem:[%s201 + $0x768] sm:$0xff]
        %v480 = vld [vmem:[%s201 + $0x770] sm:$0xff]
        %v481 = vld [vmem:[%s201 + $0x778] sm:$0xff]
        %v482 = vld [vmem:[%s201 + $0x780] sm:$0xff]
        %v483 = vld [vmem:[%s201 + $0x788] sm:$0xff]
        %v484 = vld [vmem:[%s201 + $0x790] sm:$0xff]
        %v485 = vld [vmem:[%s201 + $0x798] sm:$0xff]
        %v486 = vld [vmem:[%s201 + $0x7a0] sm:$0xff]
        %v487 = vld [vmem:[%s201 + $0x7a8] sm:$0xff]
        %v488 = vld [vmem:[%s201 + $0x7b0] sm:$0xff]
        %v489 = vld [vmem:[%s201 + $0x7b8] sm:$0xff]
        %v490 = vld [vmem:[%s201 + $0x7c0] sm:$0xff]
        %v491 = vld [vmem:[%s201 + $0x7c8] sm:$0xff]
        %v492 = vld [vmem:[%s201 + $0x7d0] sm:$0xff]
        %v493 = vld [vmem:[%s201 + $0x7d8] sm:$0xff]
        %v494 = vld [vmem:[%s201 + $0x7e0] sm:$0xff]
        %v495 = vld [vmem:[%s201 + $0x7e8] sm:$0xff]
        %v496 = vld [vmem:[%s201 + $0x7f0] sm:$0xff]
        %v497 = vld [vmem:[%s201 + $0x7f8] sm:$0xff]
        %v498 = vld [vmem:[%s210] sm:$0x3]
        %v500 = vlaneseq
        %v501 = vshrl.u32 %v500, 7
        %v502 = vsub.s32 0, %v501
        %v503 = vrot.slane %v241, %v502
        %v504 = vlaneseq
        %v505 = vshrl.u32 %v504, 7
        %v506 = vsub.s32 1, %v505
        %v507 = vrot.slane %v241, %v506
        %v508 = vlaneseq
        %v509 = vshrl.u32 %v508, 7
        %v510 = vsub.s32 2, %v509
        %v511 = vrot.slane %v241, %v510
        %v512 = vlaneseq
        %v513 = vshrl.u32 %v512, 7
        %v514 = vsub.s32 3, %v513
        %v515 = vrot.slane %v241, %v514
        %v516 = vlaneseq
        %v517 = vshrl.u32 %v516, 7
        %v518 = vsub.s32 4, %v517
        %v519 = vrot.slane %v241, %v518
        %v520 = vlaneseq
        %v521 = vshrl.u32 %v520, 7
        %v522 = vsub.s32 5, %v521
        %v523 = vrot.slane %v241, %v522
        %v524 = vlaneseq
        %v525 = vshrl.u32 %v524, 7
        %v526 = vsub.s32 6, %v525
        %v527 = vrot.slane %v241, %v526
        %v528 = vlaneseq
        %v529 = vshrl.u32 %v528, 7
        %v530 = vsub.s32 7, %v529
        %v531 = vrot.slane %v241, %v530
        %v541 = vlaneseq
        %v542 = vshrl.u32 %v541, 7
        %v543 = vsub.s32 0, %v542
        %v544 = vrot.slane %v498, %v543
        %v545 = vlaneseq
        %v546 = vshrl.u32 %v545, 7
        %v547 = vsub.s32 1, %v546
        %v548 = vrot.slane %v498, %v547
        %551 = vmatprep.subr.mxu0 %v243
        %552 = vmatpush1.xpose.msra.mxu0 %v242
        %553 = vmatprep.subr.mxu0 %v251
        %554 = vmatpush1.xpose.msra.mxu0 %v250
        %555 = vmatprep.subr.mxu0 %v259
        %556 = vmatpush1.xpose.msra.mxu0 %v258
        %557 = vmatprep.subr.mxu0 %v267
        %558 = vmatpush1.xpose.msra.mxu0 %v266
        %559 = vmatprep.subr.mxu0 %v275
        %560 = vmatpush1.xpose.msra.mxu0 %v274
        %561 = vmatprep.subr.mxu0 %v283
        %562 = vmatpush1.xpose.msra.mxu0 %v282
        %563 = vmatprep.subr.mxu0 %v291
        %564 = vmatpush1.xpose.msra.mxu0 %v290
        %565 = vmatprep.subr.mxu0 %v299
        %566 = vmatpush1.xpose.msra.mxu0 %v298
        %567 = vmatprep.subr.mxu0 %v307
        %568 = vmatpush1.xpose.msra.mxu0 %v306
        %569 = vmatprep.subr.mxu0 %v315
        %570 = vmatpush1.xpose.msra.mxu0 %v314
        %571 = vmatprep.subr.mxu0 %v323
        %572 = vmatpush1.xpose.msra.mxu0 %v322
        %573 = vmatprep.subr.mxu0 %v331
        %574 = vmatpush1.xpose.msra.mxu0 %v330
        %575 = vmatprep.subr.mxu0 %v339
        %576 = vmatpush1.xpose.msra.mxu0 %v338
        %577 = vmatprep.subr.mxu0 %v347
        %578 = vmatpush1.xpose.msra.mxu0 %v346
        %579 = vmatprep.subr.mxu0 %v355
        %580 = vmatpush1.xpose.msra.mxu0 %v354
        %581 = vmatprep.subr.mxu0 %v363
        %582 = vmatpush1.xpose.msra.mxu0 %v362
        %583 = vmatprep.subr.mxu0 %v371
        %584 = vmatpush1.xpose.msra.mxu0 %v370
        %585 = vmatprep.subr.mxu0 %v379
        %586 = vmatpush1.xpose.msra.mxu0 %v378
        %587 = vmatprep.subr.mxu0 %v387
        %588 = vmatpush1.xpose.msra.mxu0 %v386
        %589 = vmatprep.subr.mxu0 %v395
        %590 = vmatpush1.xpose.msra.mxu0 %v394
        %591 = vmatprep.subr.mxu0 %v403
        %592 = vmatpush1.xpose.msra.mxu0 %v402
        %593 = vmatprep.subr.mxu0 %v411
        %594 = vmatpush1.xpose.msra.mxu0 %v410
        %595 = vmatprep.subr.mxu0 %v419
        %596 = vmatpush1.xpose.msra.mxu0 %v418
        %597 = vmatprep.subr.mxu0 %v427
        %598 = vmatpush1.xpose.msra.mxu0 %v426
        %599 = vmatprep.subr.mxu0 %v435
        %600 = vmatpush1.xpose.msra.mxu0 %v434
        %601 = vmatprep.subr.mxu0 %v443
        %602 = vmatpush1.xpose.msra.mxu0 %v442
        %603 = vmatprep.subr.mxu0 %v451
        %604 = vmatpush1.xpose.msra.mxu0 %v450
        %605 = vmatprep.subr.mxu0 %v459
        %606 = vmatpush1.xpose.msra.mxu0 %v458
        %607 = vmatprep.subr.mxu0 %v467
        %608 = vmatpush1.xpose.msra.mxu0 %v466
        %609 = vmatprep.subr.mxu0 %v475
        %610 = vmatpush1.xpose.msra.mxu0 %v474
        %611 = vmatprep.subr.mxu0 %v483
        %612 = vmatpush1.xpose.msra.mxu0 %v482
        %613 = vmatprep.subr.mxu0 %v491
        %614 = vmatpush1.xpose.msra.mxu0 %v490
        %615 = vmatprep.mubr.f32.mxu0 %v507
        %616 = vmatmul.mubr.f32.gmra.mrb[0].mxu0 %v503
        %v617 = vpop.f32.mrb[0].mxu0
        %v618 = vadd.f32 %v544, %v617
        %v619 = vpop.f32.mrb[0].mxu0
        %v620 = vadd.f32 %v548, %v619
        %621 = vdwg.mxu0
        %622 = vmatprep.subr.mxu0 %v245
        %623 = vmatpush1.xpose.msra.mxu0 %v244
        %624 = vmatprep.subr.mxu0 %v253
        %625 = vmatpush1.xpose.msra.mxu0 %v252
        %626 = vmatprep.subr.mxu0 %v261
        %627 = vmatpush1.xpose.msra.mxu0 %v260
        %628 = vmatprep.subr.mxu0 %v269
        %629 = vmatpush1.xpose.msra.mxu0 %v268
        %630 = vmatprep.subr.mxu0 %v277
        %631 = vmatpush1.xpose.msra.mxu0 %v276
        %632 = vmatprep.subr.mxu0 %v285
        %633 = vmatpush1.xpose.msra.mxu0 %v284
        %634 = vmatprep.subr.mxu0 %v293
        %635 = vmatpush1.xpose.msra.mxu0 %v292
        %636 = vmatprep.subr.mxu0 %v301
        %637 = vmatpush1.xpose.msra.mxu0 %v300
        %638 = vmatprep.subr.mxu0 %v309
        %639 = vmatpush1.xpose.msra.mxu0 %v308
        %640 = vmatprep.subr.mxu0 %v317
        %641 = vmatpush1.xpose.msra.mxu0 %v316
        %642 = vmatprep.subr.mxu0 %v325
        %643 = vmatpush1.xpose.msra.mxu0 %v324
        %644 = vmatprep.subr.mxu0 %v333
        %645 = vmatpush1.xpose.msra.mxu0 %v332
        %646 = vmatprep.subr.mxu0 %v341
        %647 = vmatpush1.xpose.msra.mxu0 %v340
        %648 = vmatprep.subr.mxu0 %v349
        %649 = vmatpush1.xpose.msra.mxu0 %v348
        %650 = vmatprep.subr.mxu0 %v357
        %651 = vmatpush1.xpose.msra.mxu0 %v356
        %652 = vmatprep.subr.mxu0 %v365
        %653 = vmatpush1.xpose.msra.mxu0 %v364
        %654 = vmatprep.subr.mxu0 %v373
        %655 = vmatpush1.xpose.msra.mxu0 %v372
        %656 = vmatprep.subr.mxu0 %v381
        %657 = vmatpush1.xpose.msra.mxu0 %v380
        %658 = vmatprep.subr.mxu0 %v389
        %659 = vmatpush1.xpose.msra.mxu0 %v388
        %660 = vmatprep.subr.mxu0 %v397
        %661 = vmatpush1.xpose.msra.mxu0 %v396
        %662 = vmatprep.subr.mxu0 %v405
        %663 = vmatpush1.xpose.msra.mxu0 %v404
        %664 = vmatprep.subr.mxu0 %v413
        %665 = vmatpush1.xpose.msra.mxu0 %v412
        %666 = vmatprep.subr.mxu0 %v421
        %667 = vmatpush1.xpose.msra.mxu0 %v420
        %668 = vmatprep.subr.mxu0 %v429
        %669 = vmatpush1.xpose.msra.mxu0 %v428
        %670 = vmatprep.subr.mxu0 %v437
        %671 = vmatpush1.xpose.msra.mxu0 %v436
        %672 = vmatprep.subr.mxu0 %v445
        %673 = vmatpush1.xpose.msra.mxu0 %v444
        %674 = vmatprep.subr.mxu0 %v453
        %675 = vmatpush1.xpose.msra.mxu0 %v452
        %676 = vmatprep.subr.mxu0 %v461
        %677 = vmatpush1.xpose.msra.mxu0 %v460
        %678 = vmatprep.subr.mxu0 %v469
        %679 = vmatpush1.xpose.msra.mxu0 %v468
        %680 = vmatprep.subr.mxu0 %v477
        %681 = vmatpush1.xpose.msra.mxu0 %v476
        %682 = vmatprep.subr.mxu0 %v485
        %683 = vmatpush1.xpose.msra.mxu0 %v484
        %684 = vmatprep.subr.mxu0 %v493
        %685 = vmatpush1.xpose.msra.mxu0 %v492
        %686 = vmatprep.mubr.f32.mxu0 %v515
        %687 = vmatmul.mubr.f32.gmra.mrb[0].mxu0 %v511
        %v688 = vpop.f32.mrb[0].mxu0
        %v689 = vadd.f32 %v618, %v688
        %v690 = vpop.f32.mrb[0].mxu0
        %v691 = vadd.f32 %v620, %v690
        %692 = vdwg.mxu0
        %693 = vmatprep.subr.mxu0 %v247
        %694 = vmatpush1.xpose.msra.mxu0 %v246
        %695 = vmatprep.subr.mxu0 %v255
        %696 = vmatpush1.xpose.msra.mxu0 %v254
        %697 = vmatprep.subr.mxu0 %v263
        %698 = vmatpush1.xpose.msra.mxu0 %v262
        %699 = vmatprep.subr.mxu0 %v271
        %700 = vmatpush1.xpose.msra.mxu0 %v270
        %701 = vmatprep.subr.mxu0 %v279
        %702 = vmatpush1.xpose.msra.mxu0 %v278
        %703 = vmatprep.subr.mxu0 %v287
        %704 = vmatpush1.xpose.msra.mxu0 %v286
        %705 = vmatprep.subr.mxu0 %v295
        %706 = vmatpush1.xpose.msra.mxu0 %v294
        %707 = vmatprep.subr.mxu0 %v303
        %708 = vmatpush1.xpose.msra.mxu0 %v302
        %709 = vmatprep.subr.mxu0 %v311
        %710 = vmatpush1.xpose.msra.mxu0 %v310
        %711 = vmatprep.subr.mxu0 %v319
        %712 = vmatpush1.xpose.msra.mxu0 %v318
        %713 = vmatprep.subr.mxu0 %v327
        %714 = vmatpush1.xpose.msra.mxu0 %v326
        %715 = vmatprep.subr.mxu0 %v335
        %716 = vmatpush1.xpose.msra.mxu0 %v334
        %717 = vmatprep.subr.mxu0 %v343
        %718 = vmatpush1.xpose.msra.mxu0 %v342
        %719 = vmatprep.subr.mxu0 %v351
        %720 = vmatpush1.xpose.msra.mxu0 %v350
        %721 = vmatprep.subr.mxu0 %v359
        %722 = vmatpush1.xpose.msra.mxu0 %v358
        %723 = vmatprep.subr.mxu0 %v367
        %724 = vmatpush1.xpose.msra.mxu0 %v366
        %725 = vmatprep.subr.mxu0 %v375
        %726 = vmatpush1.xpose.msra.mxu0 %v374
        %727 = vmatprep.subr.mxu0 %v383
        %728 = vmatpush1.xpose.msra.mxu0 %v382
        %729 = vmatprep.subr.mxu0 %v391
        %730 = vmatpush1.xpose.msra.mxu0 %v390
        %731 = vmatprep.subr.mxu0 %v399
        %732 = vmatpush1.xpose.msra.mxu0 %v398
        %733 = vmatprep.subr.mxu0 %v407
        %734 = vmatpush1.xpose.msra.mxu0 %v406
        %735 = vmatprep.subr.mxu0 %v415
        %736 = vmatpush1.xpose.msra.mxu0 %v414
        %737 = vmatprep.subr.mxu0 %v423
        %738 = vmatpush1.xpose.msra.mxu0 %v422
        %739 = vmatprep.subr.mxu0 %v431
        %740 = vmatpush1.xpose.msra.mxu0 %v430
        %741 = vmatprep.subr.mxu0 %v439
        %742 = vmatpush1.xpose.msra.mxu0 %v438
        %743 = vmatprep.subr.mxu0 %v447
        %744 = vmatpush1.xpose.msra.mxu0 %v446
        %745 = vmatprep.subr.mxu0 %v455
        %746 = vmatpush1.xpose.msra.mxu0 %v454
        %747 = vmatprep.subr.mxu0 %v463
        %748 = vmatpush1.xpose.msra.mxu0 %v462
        %749 = vmatprep.subr.mxu0 %v471
        %750 = vmatpush1.xpose.msra.mxu0 %v470
        %751 = vmatprep.subr.mxu0 %v479
        %752 = vmatpush1.xpose.msra.mxu0 %v478
        %753 = vmatprep.subr.mxu0 %v487
        %754 = vmatpush1.xpose.msra.mxu0 %v486
        %755 = vmatprep.subr.mxu0 %v495
        %756 = vmatpush1.xpose.msra.mxu0 %v494
        %757 = vmatprep.mubr.f32.mxu0 %v523
        %758 = vmatmul.mubr.f32.gmra.mrb[0].mxu0 %v519
        %v759 = vpop.f32.mrb[0].mxu0
        %v760 = vadd.f32 %v689, %v759
        %v761 = vpop.f32.mrb[0].mxu0
        %v762 = vadd.f32 %v691, %v761
        %763 = vdwg.mxu0
        %764 = vmatprep.subr.mxu0 %v249
        %765 = vmatpush1.xpose.msra.mxu0 %v248
        %766 = vmatprep.subr.mxu0 %v257
        %767 = vmatpush1.xpose.msra.mxu0 %v256
        %768 = vmatprep.subr.mxu0 %v265
        %769 = vmatpush1.xpose.msra.mxu0 %v264
        %770 = vmatprep.subr.mxu0 %v273
        %771 = vmatpush1.xpose.msra.mxu0 %v272
        %772 = vmatprep.subr.mxu0 %v281
        %773 = vmatpush1.xpose.msra.mxu0 %v280
        %774 = vmatprep.subr.mxu0 %v289
        %775 = vmatpush1.xpose.msra.mxu0 %v288
        %776 = vmatprep.subr.mxu0 %v297
        %777 = vmatpush1.xpose.msra.mxu0 %v296
        %778 = vmatprep.subr.mxu0 %v305
        %779 = vmatpush1.xpose.msra.mxu0 %v304
        %780 = vmatprep.subr.mxu0 %v313
        %781 = vmatpush1.xpose.msra.mxu0 %v312
        %782 = vmatprep.subr.mxu0 %v321
        %783 = vmatpush1.xpose.msra.mxu0 %v320
        %784 = vmatprep.subr.mxu0 %v329
        %785 = vmatpush1.xpose.msra.mxu0 %v328
        %786 = vmatprep.subr.mxu0 %v337
        %787 = vmatpush1.xpose.msra.mxu0 %v336
        %788 = vmatprep.subr.mxu0 %v345
        %789 = vmatpush1.xpose.msra.mxu0 %v344
        %790 = vmatprep.subr.mxu0 %v353
        %791 = vmatpush1.xpose.msra.mxu0 %v352
        %792 = vmatprep.subr.mxu0 %v361
        %793 = vmatpush1.xpose.msra.mxu0 %v360
        %794 = vmatprep.subr.mxu0 %v369
        %795 = vmatpush1.xpose.msra.mxu0 %v368
        %796 = vmatprep.subr.mxu0 %v377
        %797 = vmatpush1.xpose.msra.mxu0 %v376
        %798 = vmatprep.subr.mxu0 %v385
        %799 = vmatpush1.xpose.msra.mxu0 %v384
        %800 = vmatprep.subr.mxu0 %v393
        %801 = vmatpush1.xpose.msra.mxu0 %v392
        %802 = vmatprep.subr.mxu0 %v401
        %803 = vmatpush1.xpose.msra.mxu0 %v400
        %804 = vmatprep.subr.mxu0 %v409
        %805 = vmatpush1.xpose.msra.mxu0 %v408
        %806 = vmatprep.subr.mxu0 %v417
        %807 = vmatpush1.xpose.msra.mxu0 %v416
        %808 = vmatprep.subr.mxu0 %v425
        %809 = vmatpush1.xpose.msra.mxu0 %v424
        %810 = vmatprep.subr.mxu0 %v433
        %811 = vmatpush1.xpose.msra.mxu0 %v432
        %812 = vmatprep.subr.mxu0 %v441
        %813 = vmatpush1.xpose.msra.mxu0 %v440
        %814 = vmatprep.subr.mxu0 %v449
        %815 = vmatpush1.xpose.msra.mxu0 %v448
        %816 = vmatprep.subr.mxu0 %v457
        %817 = vmatpush1.xpose.msra.mxu0 %v456
        %818 = vmatprep.subr.mxu0 %v465
        %819 = vmatpush1.xpose.msra.mxu0 %v464
        %820 = vmatprep.subr.mxu0 %v473
        %821 = vmatpush1.xpose.msra.mxu0 %v472
        %822 = vmatprep.subr.mxu0 %v481
        %823 = vmatpush1.xpose.msra.mxu0 %v480
        %824 = vmatprep.subr.mxu0 %v489
        %825 = vmatpush1.xpose.msra.mxu0 %v488
        %826 = vmatprep.subr.mxu0 %v497
        %827 = vmatpush1.xpose.msra.mxu0 %v496
        %828 = vmatprep.mubr.f32.mxu0 %v531
        %829 = vmatmul.mubr.f32.gmra.mrb[0].mxu0 %v527
        %v830 = vpop.f32.mrb[0].mxu0
        %v831 = vadd.f32 %v760, %v830
        %v832 = vpop.f32.mrb[0].mxu0
        %v833 = vadd.f32 %v762, %v832
        %834 = vdwg.mxu0
        %v835 = vadd.f32 %v831, 3.0
        %v836 = vadd.f32 %v833, 3.0
        %v837 = vmax.f32 %v835, 0.0
        %v838 = vmax.f32 %v836, 0.0
        %v839 = vmin.f32 %v837, 6.0
        %v840 = vmin.f32 %v838, 6.0
        %v841 = vmul.f32 %v839, 0.16666667
        %v842 = vmul.f32 %v840, 0.16666667
        %v845 = vcombine.low %v841, %v842
        %v847 = vunpack.c.l.s4 1966171168
        %v848 = vunpack.c.0.s8 %v847
        %v849 = vlaneseq
        %v850 = vshrl.u32 %v849, 7
        %v851 = vsub.s32 %v848, %v850
        %v852 = vrot.slane %v845, %v851
        %v854 = vunpack.c.l.s4 1966171168
        %v855 = vunpack.c.0.s8 %v854
        %v856 = vlaneseq
        %v857 = vshrl.u32 %v856, 7
        %v858 = vsub.s32 %v855, %v857
        %v859 = vrot.slane %v852, %v858
        %v861 = vlaneseq
        %vm862 = vcmp.ge.s32.totalorder %v861, 0
        %vm863 = vcmp.lt.s32.totalorder %v861, 256
        %vm864 = vmand %vm862, %vm863
        %865 = vst.msk [vmem:[%s237] sm:$0x3] %vm864, %v859
        %s866 = sand.u32 %s102, 1
        %s867 = scalar_lea.sflag [#allocation4], %s866
        %s868 = sand.u32 %s102, 1
        %s869 = smul.addr %s868, 2
        %s870 = scalar_lea.vmem [#allocation8], %s869
        // Predicated region
        $region45: #{linear_hardsigmoid.1} parent=31 // pred_check
          %p871 = pneg %p112
        $region46: #{linear_hardsigmoid.1} parent=31 // pred_check_branch
          %873 = sbr.rel (%p871) target = $region48
        $region47: #{linear_hardsigmoid.1} parent=31 // pred_region
          %s874 = smul.u32 2, %s21
          %s876 = ssub.s32 32, 32
          %877 = vsyncadd %s867, %s876
          %s878 = smul.addr %s874, 16
          %s879 = scalar_lea.hbm %s3, %s878
          %s881 = sshll.u32 %s870, 4
          %s882 = int_to_ptr.vmem [resolvable:$true] %s881
          %884 = dma.vmem_to_hbm [thread:$0]  %s882, 32, %s879, %s867
        $region48: #{linear_hardsigmoid.1} parent=31 // pred_fallthru
          _
      $region32: #{linear_hardsigmoid.1} parent=5 // pred_fallthru
        _
      %p885 = scmp.le.s32.totalorder 2, %s16
      // Predicated region
      $region49: #{linear_hardsigmoid.1} parent=5 // pred_check
        %p886 = pneg %p885
      $region50: #{linear_hardsigmoid.1} parent=5 // pred_check_branch
        %888 = sbr.rel (%p886) target = $region52
      $region51: #{linear_hardsigmoid.1} parent=5 // pred_region
        %s889 = ssub.s32 %s16, 2
        // Predicated region
        $region53: #{linear_hardsigmoid.1} parent=51 // pred_check
          %p890 = pneg %p118
        $region54: #{linear_hardsigmoid.1} parent=51 // pred_check_branch
          %892 = sbr.rel (%p890) target = $region56
        $region55: #{linear_hardsigmoid.1} parent=51 // pred_region
          %s893 = sand.u32 %s103, 1
          %s894 = scalar_lea.sflag [#allocation4], %s893
          %s895 = sand.u32 %s103, 1
          %s896 = smul.addr %s895, 2
          %s897 = scalar_lea.vmem [#allocation8], %s896
          %898 = dma.done %s894, 32
        $region56: #{linear_hardsigmoid.1} parent=51 // pred_fallthru
          _
      $region52: #{linear_hardsigmoid.1} parent=5 // pred_fallthru
        _
    $region6: #{linear_hardsigmoid.1} parent=1 // loop_footer
      %s20 = sadd.s32 1, %s16
    $region7: #{linear_hardsigmoid.1} parent=1 // loop_footer_branch
      %15 = sbr.rel target = $region3
    $region8: #{linear_hardsigmoid.1} parent=1 // loop_exit
      _
    %899 = vsyncpa [#allocation3], 1
    %s900 = scalar_lea.sflag [#allocation3], 1
    %901 = vsyncpa %s900, 1
    %902 = vsyncpa [#allocation6], 1
    %s903 = scalar_lea.sflag [#allocation6], 1
    %904 = vsyncpa %s903, 1
    %905 = vsyncpa [#allocation4], 1
    %s906 = scalar_lea.sflag [#allocation4], 1
    %907 = vsyncpa %s906, 1

</llo_original>
